<compile_context>
chip_gen: v5e
topology: v5e:2x2
jax: 0.10.0
libtpu: 0.0.40
codegen_flags: <defaults>
</compile_context>

<pallas_src>
import jax
import jax.numpy as jnp
from jax.experimental import pallas as pl
from jax.experimental.pallas import tpu as pltpu


def _round_up(x, m):
    return ((x + m - 1) // m) * m


def _critic_kernel(x_ref, w12_ref, w3_ref, p_ref, out_ref):
    """One batch tile of the fused BisimWassCritic forward.

    x_ref   : (TB, D_in)  concat([zk, zi, ai, zj, aj], -1)
    w12_ref : (D_in, 2H)  block-diag(W1, W2)     (spectral-norm applied to W1)
    w3_ref  : (2H, H)     combine_net[0] weight  (spectral-norm applied)
    p_ref   : (4, 2H)     row0 = [b1 | b2]
                          row1 = [b3 | 0]
                          row2 = [w4_row | 0]    (spectral-norm applied)
                          row3 = [b4, 0, ...]
    out_ref : (TB, 1)
    """
    h_dim = w3_ref.shape[1]

    b12 = p_ref[0:1, :]                 # (1, 2H)
    b3 = p_ref[1:2, :h_dim]             # (1, H)
    w4 = p_ref[2:3, :h_dim]             # (1, H)
    b4 = p_ref[3:4, 0:1]                # (1, 1)

    # [arg || cond] = ReLU(x @ blockdiag(W1, W2) + [b1 | b2])   -- one MXU push
    ac = jnp.dot(x_ref[...], w12_ref[...], preferred_element_type=jnp.float32)
    ac = jnp.maximum(ac + b12, 0.0)

    # combine_net[0]: ReLU([arg || cond] @ W3 + b3)             -- one MXU push
    h = jnp.dot(ac, w3_ref[...], preferred_element_type=jnp.float32)
    h = jnp.maximum(h + b3, 0.0)

    # combine_net[2]: Linear(H -> 1) on the VPU (mul) + XLU (lane reduce);
    # avoids an N=1 MXU matmul that pays full push/drain latency.
    out = jnp.sum(h * w4, axis=-1, keepdims=True) + b4
    out_ref[...] = out.astype(out_ref.dtype)


def _spectral_normalize(w):
    # w: (out_features, in_features) as in PyTorch.  W / sigma_max(W).
    sigma = jnp.linalg.svd(w, compute_uv=False)[0]
    return w / sigma


def init_raw_params(key, z_dim, a_dim, hidden_dim, dtype=jnp.float32):
    """PyTorch-Linear-shaped params, spectral-normalized where the module does.
    Weights returned pre-transposed to (in, out) for x @ W."""
    ks = jax.random.split(key, 8)
    cond_in = 2 * (z_dim + a_dim)

    def lin(kw, kb, fan_in, fan_out, sn):
        bound = float(fan_in) ** -0.5
        w = jax.random.uniform(kw, (fan_out, fan_in), dtype, -bound, bound)
        bv = jax.random.uniform(kb, (fan_out,), dtype, -bound, bound)
        if sn:
            w = _spectral_normalize(w)
        return w.T, bv.reshape(1, fan_out)          # (in, out), (1, out)

    w1, b1 = lin(ks[0], ks[1], z_dim, hidden_dim, sn=True)            # arg_net
    w2, b2 = lin(ks[2], ks[3], cond_in, hidden_dim, sn=False)         # cond_net
    w3, b3 = lin(ks[4], ks[5], 2 * hidden_dim, hidden_dim, sn=True)   # combine_net[0]
    w4, b4 = lin(ks[6], ks[7], hidden_dim, 1, sn=True)                # combine_net[2]
    return dict(w1=w1, b1=b1, w2=w2, b2=b2, w3=w3, b3=b3, w4=w4, b4=b4)


def pack_params(raw, z_dim, a_dim, hidden_dim):
    """Pack the 8 small parameter tensors into the 3 refs the kernel consumes."""
    cond_in = 2 * (z_dim + a_dim)
    d_in = z_dim + cond_in
    dtype = raw["w1"].dtype

    # block-diagonal [W1 0; 0 W2]: one matmul yields [arg_pre || cond_pre]
    w12 = jnp.zeros((d_in, 2 * hidden_dim), dtype)
    w12 = w12.at[:z_dim, :hidden_dim].set(raw["w1"])
    w12 = w12.at[z_dim:, hidden_dim:].set(raw["w2"])

    # small buffer: biases + final projection row + final bias
    p = jnp.zeros((4, 2 * hidden_dim), dtype)
    p = p.at[0, :].set(jnp.concatenate([raw["b1"][0], raw["b2"][0]]))
    p = p.at[1, :hidden_dim].set(raw["b3"][0])
    p = p.at[2, :hidden_dim].set(raw["w4"][:, 0])
    p = p.at[3, 0].set(raw["b4"][0, 0])

    return dict(w12=w12, w3=raw["w3"], p=p)


def bisim_wass_critic(params, zk, zi, ai, zj, aj, *, block_b=512):
    """Forward pass.  zk/zi/zj: (B, z_dim); ai/aj: (B, a_dim).  Returns (B, 1)."""
    x = jnp.concatenate([zk, zi, ai, zj, aj], axis=-1)   # glue concat -> (B, D_in)
    b, d_in = x.shape
    w12, w3, p = params["w12"], params["w3"], params["p"]

    # batch tile: multiple of 8 (sublane alignment); block_b=512 keeps the
    # double-buffered activation tile tiny vs. VMEM on all generations (v7x 64 MiB incl.)
    tb = min(block_b, _round_up(b, 8))
    b_pad = _round_up(b, tb)
    if b_pad != b:
        x = jnp.pad(x, ((0, b_pad - b), (0, 0)))

    out = pl.pallas_call(
        _critic_kernel,
        out_shape=jax.ShapeDtypeStruct((b_pad, 1), zk.dtype),
        grid_spec=pltpu.PrefetchScalarGridSpec(
            num_scalar_prefetch=0,
            grid=(b_pad // tb,),
            in_specs=[
                pl.BlockSpec((tb, d_in), lambda i: (i, 0)),   # streamed activations
                pl.BlockSpec(w12.shape, lambda i: (0, 0)),    # VMEM-resident weights
                pl.BlockSpec(w3.shape, lambda i: (0, 0)),
                pl.BlockSpec(p.shape, lambda i: (0, 0)),
            ],
            # (tb, 1): last dim equals the full array dim.  Output is 4 bytes/row,
            # so the masked stores are negligible; for very large B switch to a
            # (1, B) lane-dense layout.
            out_specs=pl.BlockSpec((tb, 1), lambda i: (i, 0)),
        ),
        compiler_params=pltpu.CompilerParams(
            dimension_semantics=("parallel",)),   # megacore sharding on v7x
    )(x, w12, w3, p)
    return out[:b]


def _reference(raw, zk, zi, ai, zj, aj):
    # pure-JAX reference for sanity checking (uses the unpacked params)
    cond_in = jnp.concatenate([zi, ai, zj, aj], axis=-1)
    arg = jax.nn.relu(zk @ raw["w1"] + raw["b1"])
    cond = jax.nn.relu(cond_in @ raw["w2"] + raw["b2"])
    h = jax.nn.relu(jnp.concatenate([arg, cond], axis=-1) @ raw["w3"] + raw["b3"])
    return h @ raw["w4"] + raw["b4"]


if __name__ == "__main__":
    z_dim, a_dim, hidden_dim = 8, 4, 32
    key = jax.random.PRNGKey(0)
    kp, kd = jax.random.split(key)

    raw = init_raw_params(kp, z_dim, a_dim, hidden_dim)
    params = pack_params(raw, z_dim, a_dim, hidden_dim)

    def make_inputs(k, batch):
        kzk, kzi, kai, kzj, kaj = jax.random.split(k, 5)
        return (jax.random.normal(kzk, (batch, z_dim), jnp.float32),
                jax.random.normal(kzi, (batch, z_dim), jnp.float32),
                jax.random.normal(kai, (batch, a_dim), jnp.float32),
                jax.random.normal(kzj, (batch, z_dim), jnp.float32),
                jax.random.normal(kaj, (batch, a_dim), jnp.float32))

    # small case: single grid step
    inputs_small = make_inputs(kd, 8)
    out = jax.block_until_ready(bisim_wass_critic(params, *inputs_small))
    ref = _reference(raw, *inputs_small)
    assert out.shape == (8, 1), out.shape
    assert jnp.allclose(out, ref, atol=1e-5, rtol=1e-5), (out, ref)

    # larger, non-multiple batch: exercises padding + multi-step parallel grid
    inputs_big = make_inputs(jax.random.fold_in(kd, 1), 300)
    out_big = jax.block_until_ready(
        bisim_wass_critic(params, *inputs_big, block_b=128))
    ref_big = _reference(raw, *inputs_big)
    assert out_big.shape == (300, 1), out_big.shape
    assert jnp.allclose(out_big, ref_big, atol=1e-5, rtol=1e-5)

    print("KERNEL_OK")
</pallas_src>

<mosaic_0001>
module attributes {stable_mosaic.version = 11 : i64} {
  func.func @_critic_kernel(%arg0: i32, %arg1: memref<8x32xf32, #tpu.memory_space<vmem>>, %arg2: memref<32x64xf32, #tpu.memory_space<vmem>>, %arg3: memref<64x32xf32, #tpu.memory_space<vmem>>, %arg4: memref<4x64xf32, #tpu.memory_space<vmem>>, %arg5: memref<8x1xf32, #tpu.memory_space<vmem>>) attributes {dimension_semantics = [#tpu.dimension_semantics<parallel>], iteration_bounds = array<i64: 1>, scalar_prefetch = 0 : i64, scratch_operands = 0 : i64, tpu.core_type = #tpu.core_type<tc>, window_params = [{transform_indices = @transform_0, window_bounds = array<i64: 8, 32>}, {pipeline_mode = #tpu.pipeline_mode<synchronous>, transform_indices = @transform_1, window_bounds = array<i64: 32, 64>}, {pipeline_mode = #tpu.pipeline_mode<synchronous>, transform_indices = @transform_2, window_bounds = array<i64: 64, 32>}, {pipeline_mode = #tpu.pipeline_mode<synchronous>, transform_indices = @transform_3, window_bounds = array<i64: 4, 64>}, {transform_indices = @transform_4, window_bounds = array<i64: 8, 1>}]} {
    %c0 = arith.constant 0 : index
    %c0_0 = arith.constant 0 : index
    %0 = vector.load %arg4[%c0, %c0_0] : memref<4x64xf32, #tpu.memory_space<vmem>>, vector<1x64xf32>
    %c1 = arith.constant 1 : index
    %c0_1 = arith.constant 0 : index
    %1 = vector.load %arg4[%c1, %c0_1] : memref<4x64xf32, #tpu.memory_space<vmem>>, vector<1x32xf32>
    %c2 = arith.constant 2 : index
    %c0_2 = arith.constant 0 : index
    %2 = vector.load %arg4[%c2, %c0_2] : memref<4x64xf32, #tpu.memory_space<vmem>>, vector<1x32xf32>
    %c3 = arith.constant 3 : index
    %c0_3 = arith.constant 0 : index
    %3 = vector.load %arg4[%c3, %c0_3] : memref<4x64xf32, #tpu.memory_space<vmem>>, vector<1x1xf32>
    %c0_4 = arith.constant 0 : index
    %c0_5 = arith.constant 0 : index
    %4 = vector.load %arg1[%c0_4, %c0_5] : memref<8x32xf32, #tpu.memory_space<vmem>>, vector<8x32xf32>
    %c0_6 = arith.constant 0 : index
    %c0_7 = arith.constant 0 : index
    %5 = vector.load %arg2[%c0_6, %c0_7] : memref<32x64xf32, #tpu.memory_space<vmem>>, vector<32x64xf32>
    %cst = arith.constant dense<0.000000e+00> : vector<8x64xf32>
    %6 = tpu.matmul %4, %5, %cst {dimension_numbers = #tpu.dot_dimension_numbers<[1], [0], [0], [1], [0, 0, 1, 1], [], []>} : vector<8x32xf32>, vector<32x64xf32>, vector<8x64xf32> -> vector<8x64xf32>
    %7 = vector.broadcast %0 : vector<1x64xf32> to vector<8x64xf32>
    %8 = arith.addf %6, %7 : vector<8x64xf32>
    %cst_8 = arith.constant 0.000000e+00 : f32
    %9 = vector.broadcast %cst_8 : f32 to vector<8x64xf32>
    %10 = arith.maximumf %8, %9 : vector<8x64xf32>
    %c0_9 = arith.constant 0 : index
    %c0_10 = arith.constant 0 : index
    %11 = vector.load %arg3[%c0_9, %c0_10] : memref<64x32xf32, #tpu.memory_space<vmem>>, vector<64x32xf32>
    %cst_11 = arith.constant dense<0.000000e+00> : vector<8x32xf32>
    %12 = tpu.matmul %10, %11, %cst_11 {dimension_numbers = #tpu.dot_dimension_numbers<[1], [0], [0], [1], [0, 0, 1, 1], [], []>} : vector<8x64xf32>, vector<64x32xf32>, vector<8x32xf32> -> vector<8x32xf32>
    %13 = vector.broadcast %1 : vector<1x32xf32> to vector<8x32xf32>
    %14 = arith.addf %12, %13 : vector<8x32xf32>
    %cst_12 = arith.constant 0.000000e+00 : f32
    %15 = vector.broadcast %cst_12 : f32 to vector<8x32xf32>
    %16 = arith.maximumf %14, %15 : vector<8x32xf32>
    %17 = vector.broadcast %2 : vector<1x32xf32> to vector<8x32xf32>
    %18 = arith.mulf %16, %17 : vector<8x32xf32>
    %cst_13 = arith.constant dense<0.000000e+00> : vector<8xf32>
    %19 = vector.multi_reduction <add>, %18, %cst_13 [1] : vector<8x32xf32> to vector<8xf32>
    %20 = vector.shape_cast %19 : vector<8xf32> to vector<8x1xf32>
    %21 = vector.broadcast %3 : vector<1x1xf32> to vector<8x1xf32>
    %22 = arith.addf %20, %21 : vector<8x1xf32>
    %c0_14 = arith.constant 0 : index
    %c0_15 = arith.constant 0 : index
    %23 = vector.load %arg5[%c0_14, %c0_15] : memref<8x1xf32, #tpu.memory_space<vmem>>, vector<8x1xf32>
    tpu.vector_store %arg5[%c0_14, %c0_15], %22 {strides = array<i32>} : memref<8x1xf32, #tpu.memory_space<vmem>>, vector<8x1xf32>,
    return
  }
  func.func @transform_0(%arg0: i32) -> (i32, i32) {
    %c0_i32 = arith.constant 0 : i32
    %c0_i32_0 = arith.constant 0 : i32
    return %arg0, %c0_i32 : i32, i32
  }
  func.func @transform_1(%arg0: i32) -> (i32, i32) {
    %c0_i32 = arith.constant 0 : i32
    %c0_i32_0 = arith.constant 0 : i32
    %c0_i32_1 = arith.constant 0 : i32
    return %c0_i32, %c0_i32_0 : i32, i32
  }
  func.func @transform_2(%arg0: i32) -> (i32, i32) {
    %c0_i32 = arith.constant 0 : i32
    %c0_i32_0 = arith.constant 0 : i32
    %c0_i32_1 = arith.constant 0 : i32
    return %c0_i32, %c0_i32_0 : i32, i32
  }
  func.func @transform_3(%arg0: i32) -> (i32, i32) {
    %c0_i32 = arith.constant 0 : i32
    %c0_i32_0 = arith.constant 0 : i32
    %c0_i32_1 = arith.constant 0 : i32
    return %c0_i32, %c0_i32_0 : i32, i32
  }
  func.func @transform_4(%arg0: i32) -> (i32, i32) {
    %c0_i32 = arith.constant 0 : i32
    %c0_i32_0 = arith.constant 0 : i32
    return %arg0, %c0_i32 : i32, i32
  }
}

</mosaic_0001>

<llo_original>
// kernel: tpu_custom_call.1
$region0: #{tpu_custom_call.1}
  #allocation0 [shape = 'u32[]', space=smem, size = 0x4, offset = 0x4, fixed_abs, tag = 'smem constant byte address 0x4 - core index']
  #allocation1 [shape = 'u32[72,128]{1,0:T(1,128)}', space=vmem, size = 0x9000, scoped, tag = 'internal scratch']
  %s0 = inlined_call_operand.vmem [shape: f32[8,32], index: 0, kind: input, shape index: {}]
  %s1 = inlined_call_operand.vmem [shape: f32[32,64], index: 1, kind: input, shape index: {}]
  %s2 = inlined_call_operand.vmem [shape: f32[64,32], index: 2, kind: input, shape index: {}]
  %s3 = inlined_call_operand.vmem [shape: f32[4,64], index: 3, kind: input, shape index: {}]
  %s4 = inlined_call_operand.vmem [shape: f32[8,1], index: 4, kind: output, shape index: {}]
  %s5 = sld [smem:[#allocation0]]
  $region26: #{tpu_custom_call.1} parent=0
    _
  %s7 = ssub.s32 1, %s5
  %s8 = scalar_select 0, %s7, %s5
  // Predicated region
  $region2: #{tpu_custom_call.1} parent=0 // pred_check
    _
  $region3: #{tpu_custom_call.1} parent=0 // pred_check_branch
    %10 = sbr.rel (0) target = $region5
  $region4: #{tpu_custom_call.1} parent=0 // pred_region
    _
  $region5: #{tpu_custom_call.1} parent=0 // pred_fallthru
    _
  // Predicated region
  $region6: #{tpu_custom_call.1} parent=0 // pred_check
    _
  $region7: #{tpu_custom_call.1} parent=0 // pred_check_branch
    %12 = sbr.rel (0) target = $region9
  $region8: #{tpu_custom_call.1} parent=0 // pred_region
    _
  $region9: #{tpu_custom_call.1} parent=0 // pred_fallthru
    _
  // Predicated region
  $region10: #{tpu_custom_call.1} parent=0 // pred_check
    _
  $region11: #{tpu_custom_call.1} parent=0 // pred_check_branch
    %14 = sbr.rel (0) target = $region13
  $region12: #{tpu_custom_call.1} parent=0 // pred_region
    _
  $region13: #{tpu_custom_call.1} parent=0 // pred_fallthru
    _
  // Predicated region
  $region14: #{tpu_custom_call.1} parent=0 // pred_check
    _
  $region15: #{tpu_custom_call.1} parent=0 // pred_check_branch
    %16 = sbr.rel (0) target = $region17
  $region16: #{tpu_custom_call.1} parent=0 // pred_region
    _
  $region17: #{tpu_custom_call.1} parent=0 // pred_fallthru
    _
  %v17 = vld [vmem:[%s3] sm:$0x1]
  %v18 = vld [vmem:[%s3 + $0x1] sm:$0x1]
  %v19 = vld [vmem:[%s3 + $0x2] sm:$0x1]
  %v20 = vld [vmem:[%s3 + $0x3] sm:$0x1]
  %v21 = vld [vmem:[%s0] sm:$0xff]
  %v22 = vld [vmem:[%s1] sm:$0xff]
  %v23 = vld [vmem:[%s1 + $0x8] sm:$0xff]
  %v24 = vld [vmem:[%s1 + $0x10] sm:$0xff]
  %v25 = vld [vmem:[%s1 + $0x18] sm:$0xff]
  %v26 = vperm.slane %v17, 0
  %vm27 = vcmask 261120
  %v29 = vsel %vm27, %v21, 0
  %31 = vmatpush.msra.mxu0 0.0
  %32 = vmatpush.msra.mxu0 0.0
  %33 = vmatpush.msra.mxu0 0.0
  %34 = vmatpush.msra.mxu0 0.0
  %35 = vmatpush.msra.mxu0 0.0
  %36 = vmatpush.msra.mxu0 0.0
  %37 = vmatpush.msra.mxu0 0.0
  %38 = vmatpush.msra.mxu0 0.0
  %39 = vmatpush.msra.mxu0 0.0
  %40 = vmatpush.msra.mxu0 0.0
  %41 = vmatpush.msra.mxu0 0.0
  %42 = vmatpush.msra.mxu0 0.0
  %43 = vmatpush.msra.mxu0 %v25
  %44 = vmatpush.msra.mxu0 %v24
  %45 = vmatpush.msra.mxu0 %v23
  %46 = vmatpush.msra.mxu0 %v22
  %47 = vmatmul.f32.gmra.mxu0 %v29
  %v48 = vpop.f32.mrf.mxu0
  %v49 = vadd.f32 %v26, %v48
  %50 = vdwg.mxu0
  %v51 = vmax.f32 %v49, 0.0
  %v52 = vld [vmem:[%s2] sm:$0xff]
  %v53 = vld [vmem:[%s2 + $0x8] sm:$0xff]
  %v54 = vld [vmem:[%s2 + $0x10] sm:$0xff]
  %v55 = vld [vmem:[%s2 + $0x18] sm:$0xff]
  %v56 = vld [vmem:[%s2 + $0x20] sm:$0xff]
  %v57 = vld [vmem:[%s2 + $0x28] sm:$0xff]
  %v58 = vld [vmem:[%s2 + $0x30] sm:$0xff]
  %v59 = vld [vmem:[%s2 + $0x38] sm:$0xff]
  %v60 = vperm.slane %v18, 0
  %vm61 = vcmask 523264
  %v63 = vsel %vm61, %v51, 0
  %65 = vmatpush.msra.mxu0 0.0
  %66 = vmatpush.msra.mxu0 0.0
  %67 = vmatpush.msra.mxu0 0.0
  %68 = vmatpush.msra.mxu0 0.0
  %69 = vmatpush.msra.mxu0 0.0
  %70 = vmatpush.msra.mxu0 0.0
  %71 = vmatpush.msra.mxu0 0.0
  %72 = vmatpush.msra.mxu0 0.0
  %73 = vmatpush.msra.mxu0 %v59
  %74 = vmatpush.msra.mxu0 %v58
  %75 = vmatpush.msra.mxu0 %v57
  %76 = vmatpush.msra.mxu0 %v56
  %77 = vmatpush.msra.mxu0 %v55
  %78 = vmatpush.msra.mxu0 %v54
  %79 = vmatpush.msra.mxu0 %v53
  %80 = vmatpush.msra.mxu0 %v52
  %81 = vmatmul.f32.gmra.mxu0 %v63
  %v82 = vpop.f32.mrf.mxu0
  %v83 = vadd.f32 %v60, %v82
  %84 = vdwg.mxu0
  %v85 = vmax.f32 %v83, 0.0
  %v86 = vperm.slane %v19, 0
  %v87 = vmul.f32 %v85, %v86
  %v88 = vsel %vm27, %v87, 0.0
  %89 = vadd.xlane.f32.xlu0 %v88
  %v90 = vpop.xlane.xlu0 %89
  %v91 = vperm.slane %v20, 0
  %v92 = vadd.f32 %v90, %v91
  %vm93 = vcmask 7168
  %94 = vst.msk [vmem:[%s4] sm:$0xff] %vm93, %v92
  // Predicated region
  $region18: #{tpu_custom_call.1} parent=0 // pred_check
    _
  $region19: #{tpu_custom_call.1} parent=0 // pred_check_branch
    %96 = sbr.rel (0) target = $region21
  $region20: #{tpu_custom_call.1} parent=0 // pred_region
    _
  $region21: #{tpu_custom_call.1} parent=0 // pred_fallthru
    _
  // Predicated region
  $region22: #{tpu_custom_call.1} parent=0 // pred_check
    _
  $region23: #{tpu_custom_call.1} parent=0 // pred_check_branch
    %98 = sbr.rel (0) target = $region25
  $region24: #{tpu_custom_call.1} parent=0 // pred_region
    _
  $region25: #{tpu_custom_call.1} parent=0 // pred_fallthru
    _

</llo_original>
